<compile_context>
chip_gen: v7x
topology: tpu7x:2x2x1
jax: 0.10.0
libtpu: 0.0.40
codegen_flags: <defaults>
</compile_context>

<pallas_src>
import functools

import jax
import jax.numpy as jnp
from jax import lax
from jax.experimental import pallas as pl
from jax.experimental.pallas import tpu as pltpu

EPS = 1e-5


def _bn_fused_kernel(x_ref, g_ref, b_ref, o_ref, *, inv_m, eps):
    """Fused BatchNorm2d forward for one channel block.

    x_ref/o_ref: (tc, HW) when N==1, else (N, tc, HW); the channel axis is always
    the second-to-last (sublane) axis. g_ref/b_ref: (tc, 1).
    """
    x = x_ref[...].astype(jnp.float32)
    red_axes = tuple(i for i in range(x.ndim) if i != x.ndim - 2)

    mean = jnp.sum(x, axis=red_axes, keepdims=True) * inv_m
    xc = x - mean
    var = jnp.sum(xc * xc, axis=red_axes, keepdims=True) * inv_m  # biased (PyTorch norm)

    g = g_ref[...].astype(jnp.float32).reshape(mean.shape)
    b = b_ref[...].astype(jnp.float32).reshape(mean.shape)
    scale = g * lax.rsqrt(var + eps)

    o_ref[...] = (xc * scale + b).astype(o_ref.dtype)


def _pick_channel_tile(C, N, HW, *, max_block_bytes=2 * 1024 * 1024, target_blocks=4):
    """Largest sublane-aligned channel tile whose f32 block fits the VMEM byte cap,
    preferring ~`target_blocks` grid steps (>=2 per TC on v7x, small grid overhead)."""
    bytes_per_ch = N * HW * 4  # f32 working copy of one channel
    cands = [C] if C * bytes_per_ch <= max_block_bytes else []
    cands += [t for t in range(8, C, 8)
              if C % t == 0 and t * bytes_per_ch <= max_block_bytes]
    if not cands:
        return None
    return min(cands, key=lambda t: (abs(C // t - target_blocks), -t))


def batchnorm2d_pallas(x_nchw, gamma, beta, *, eps=EPS):
    """Training-mode BatchNorm2d forward. x_nchw: (N, C, H, W); gamma, beta: (C,)."""
    N, C, H, W = x_nchw.shape
    HW = H * W
    M = N * HW

    tc = _pick_channel_tile(C, N, HW)
    if tc is None:
        # TODO(synk): for N*HW too large to keep a whole channel block in VMEM,
        # a two-pass (stats then normalize) tiling over HW would be needed.
        raise NotImplementedError("per-channel block does not fit the VMEM budget")

    g = gamma.reshape(C, 1).astype(jnp.float32)
    b = beta.reshape(C, 1).astype(jnp.float32)
    kernel = functools.partial(_bn_fused_kernel, inv_m=1.0 / M, eps=eps)

    grid = (C // tc,)
    gb_spec = pl.BlockSpec((tc, 1), lambda c: (c, 0))

    if N == 1:
        # Drop the degenerate batch dim: contiguous (tc, HW) blocks, single DMA span.
        x = x_nchw.reshape(C, HW)
        x_spec = pl.BlockSpec((tc, HW), lambda c: (c, 0))
        out_shape = jax.ShapeDtypeStruct((C, HW), x_nchw.dtype)
    else:
        x = x_nchw.reshape(N, C, HW)
        x_spec = pl.BlockSpec((N, tc, HW), lambda c: (0, c, 0))
        out_shape = jax.ShapeDtypeStruct((N, C, HW), x_nchw.dtype)

    out = pl.pallas_call(
        kernel,
        out_shape=out_shape,
        grid_spec=pltpu.PrefetchScalarGridSpec(
            num_scalar_prefetch=0,
            grid=grid,
            in_specs=[x_spec, gb_spec, gb_spec],
            out_specs=x_spec,
        ),
        compiler_params=pltpu.CompilerParams(
            dimension_semantics=("parallel",)),
    )(x, g, b)

    return out.reshape(N, C, H, W)               # pure view, no data movement


def _reference(x_nchw, gamma, beta):
    mean = jnp.mean(x_nchw, axis=(0, 2, 3), keepdims=True)
    var = jnp.var(x_nchw, axis=(0, 2, 3), keepdims=True)   # biased
    g = gamma.reshape(1, -1, 1, 1)
    b = beta.reshape(1, -1, 1, 1)
    return (x_nchw - mean) * lax.rsqrt(var + EPS) * g + b


if __name__ == "__main__":
    # Matches the spec: BatchNorm2d(512) on x of shape (1, 512, 28, 28).
    N, C, H, W = 1, 512, 28, 28
    key = jax.random.PRNGKey(0)
    kx, kg, kb = jax.random.split(key, 3)
    x = jax.random.normal(kx, (N, C, H, W), dtype=jnp.float32)
    # nn.BatchNorm2d default init is weight=1, bias=0; use deterministic random
    # affine params to exercise the affine path.
    gamma = 1.0 + 0.1 * jax.random.normal(kg, (C,), dtype=jnp.float32)
    beta = 0.1 * jax.random.normal(kb, (C,), dtype=jnp.float32)

    out = jax.block_until_ready(batchnorm2d_pallas(x, gamma, beta))
    ref = _reference(x, gamma, beta)
    assert out.shape == (N, C, H, W)
    assert jnp.allclose(out, ref, atol=1e-4, rtol=1e-4), float(jnp.max(jnp.abs(out - ref)))
    print("KERNEL_OK")
</pallas_src>

<mosaic_0001>
module attributes {stable_mosaic.version = 11 : i64} {
  func.func @_bn_fused_kernel(%arg0: i32, %arg1: memref<128x784xf32, #tpu.memory_space<vmem>>, %arg2: memref<128x1xf32, #tpu.memory_space<vmem>>, %arg3: memref<128x1xf32, #tpu.memory_space<vmem>>, %arg4: memref<128x784xf32, #tpu.memory_space<vmem>>) attributes {dimension_semantics = [#tpu.dimension_semantics<parallel>], iteration_bounds = array<i64: 4>, scalar_prefetch = 0 : i64, scratch_operands = 0 : i64, tpu.core_type = #tpu.core_type<tc>, window_params = [{transform_indices = @transform_0, window_bounds = array<i64: 128, 784>}, {transform_indices = @transform_1, window_bounds = array<i64: 128, 1>}, {transform_indices = @transform_2, window_bounds = array<i64: 128, 1>}, {transform_indices = @transform_3, window_bounds = array<i64: 128, 784>}]} {
    %c0 = arith.constant 0 : index
    %c0_0 = arith.constant 0 : index
    %0 = vector.load %arg1[%c0, %c0_0] : memref<128x784xf32, #tpu.memory_space<vmem>>, vector<128x784xf32>
    %cst = arith.constant dense<0.000000e+00> : vector<128xf32>
    %1 = vector.multi_reduction <add>, %0, %cst [1] : vector<128x784xf32> to vector<128xf32>
    %2 = vector.shape_cast %1 : vector<128xf32> to vector<128x1xf32>
    %cst_1 = arith.constant 0.00127551018 : f32
    %3 = vector.broadcast %cst_1 : f32 to vector<128x1xf32>
    %4 = arith.mulf %2, %3 : vector<128x1xf32>
    %5 = vector.broadcast %4 : vector<128x1xf32> to vector<128x784xf32>
    %6 = arith.subf %0, %5 : vector<128x784xf32>
    %7 = arith.mulf %6, %6 : vector<128x784xf32>
    %cst_2 = arith.constant dense<0.000000e+00> : vector<128xf32>
    %8 = vector.multi_reduction <add>, %7, %cst_2 [1] : vector<128x784xf32> to vector<128xf32>
    %9 = vector.shape_cast %8 : vector<128xf32> to vector<128x1xf32>
    %cst_3 = arith.constant 0.00127551018 : f32
    %10 = vector.broadcast %cst_3 : f32 to vector<128x1xf32>
    %11 = arith.mulf %9, %10 : vector<128x1xf32>
    %c0_4 = arith.constant 0 : index
    %c0_5 = arith.constant 0 : index
    %12 = vector.load %arg2[%c0_4, %c0_5] : memref<128x1xf32, #tpu.memory_space<vmem>>, vector<128x1xf32>
    %c0_6 = arith.constant 0 : index
    %c0_7 = arith.constant 0 : index
    %13 = vector.load %arg3[%c0_6, %c0_7] : memref<128x1xf32, #tpu.memory_space<vmem>>, vector<128x1xf32>
    %cst_8 = arith.constant 9.99999974E-6 : f32
    %14 = vector.broadcast %cst_8 : f32 to vector<128x1xf32>
    %15 = arith.addf %11, %14 : vector<128x1xf32>
    %16 = math.rsqrt %15 : vector<128x1xf32>
    %17 = arith.mulf %12, %16 : vector<128x1xf32>
    %18 = vector.broadcast %17 : vector<128x1xf32> to vector<128x784xf32>
    %19 = arith.mulf %6, %18 : vector<128x784xf32>
    %20 = vector.broadcast %13 : vector<128x1xf32> to vector<128x784xf32>
    %21 = arith.addf %19, %20 : vector<128x784xf32>
    %c0_9 = arith.constant 0 : index
    %c0_10 = arith.constant 0 : index
    %22 = vector.load %arg4[%c0_9, %c0_10] : memref<128x784xf32, #tpu.memory_space<vmem>>, vector<128x784xf32>
    tpu.vector_store %arg4[%c0_9, %c0_10], %21 {strides = array<i32>} : memref<128x784xf32, #tpu.memory_space<vmem>>, vector<128x784xf32>,
    return
  }
  func.func @transform_0(%arg0: i32) -> (i32, i32) {
    %c0_i32 = arith.constant 0 : i32
    %c0_i32_0 = arith.constant 0 : i32
    return %arg0, %c0_i32 : i32, i32
  }
  func.func @transform_1(%arg0: i32) -> (i32, i32) {
    %c0_i32 = arith.constant 0 : i32
    %c0_i32_0 = arith.constant 0 : i32
    return %arg0, %c0_i32 : i32, i32
  }
  func.func @transform_2(%arg0: i32) -> (i32, i32) {
    %c0_i32 = arith.constant 0 : i32
    %c0_i32_0 = arith.constant 0 : i32
    return %arg0, %c0_i32 : i32, i32
  }
  func.func @transform_3(%arg0: i32) -> (i32, i32) {
    %c0_i32 = arith.constant 0 : i32
    %c0_i32_0 = arith.constant 0 : i32
    return %arg0, %c0_i32 : i32, i32
  }
}

</mosaic_0001>

<llo_original>
// kernel: tpu_custom_call.1
$region0: #{tpu_custom_call.1}
  #allocation0 [shape = 'u32[]', space=smem, size = 0x4, offset = 0x4, fixed_abs, tag = 'smem constant byte address 0x4 - core index']
  #allocation1 [shape = 'u32[144,128]{1,0:T(1,128)}', space=vmem, size = 0x12000, scoped, tag = 'internal scratch']
  %s0 = inlined_call_operand.vmem [shape: f32[512,784], index: 0, kind: input, shape index: {}]
  %s1 = inlined_call_operand.vmem [shape: f32[512,1], index: 1, kind: input, shape index: {}]
  %s2 = inlined_call_operand.vmem [shape: f32[512,1], index: 2, kind: input, shape index: {}]
  %s3 = inlined_call_operand.vmem [shape: f32[512,784], index: 3, kind: output, shape index: {}]
  %s4 = sld [smem:[#allocation0]]
  $region45: #{tpu_custom_call.1} parent=0
    _
  %s6 = ssub.s32 1, %s4
  %s7 = scalar_select 0, %s6, %s4
  loop: start=0, step=1, limit=6
  $region2: #{tpu_custom_call.1} parent=0 // loop_pre_header
    _
  $region3: #{tpu_custom_call.1} parent=0 // loop_header
    %s9 = sphi 0, %s13
    %p10 = scmp.ge.s32.totalorder %s9, 6
    %s19 = sphi 0, %s21
    %s22 = sphi 0, %s19
    %s23 = sphi 0, %s22
    %s39 = sphi 0, %s23
    %s45 = sphi 0, %s47
    %s48 = sphi 0, %s45
    %s49 = sphi 0, %s48
    %s65 = sphi 0, %s49
    %s71 = sphi 0, %s73
    %s74 = sphi 0, %s71
    %s75 = sphi 0, %s74
    %s91 = sphi 0, %s75
    %s97 = sphi 0, %s99
    %s100 = sphi 0, %s97
    %s101 = sphi 0, %s100
    %s117 = sphi 0, %s101
  $region4: #{tpu_custom_call.1} parent=0 // loop_header_branch
    %12 = sbr.rel (%p10) target = $region8
  $region5: #{tpu_custom_call.1} parent=0 // loop_body
    %s14 = ssub.s32 %s9, 1
    %s15 = ssub.s32 %s9, 2
    %s16 = sadd.s32 %s9, 1
    %s17 = ssub.s32 %s9, %s16
    %p18 = scmp.eq.s32.totalorder %s17, 0
    %s20 = sadd.s32 %s19, 1
    %s21 = scalar_select %p18, %s19, %s20
    %p24 = pneg %p18
    %p25 = scmp.eq.s32.totalorder %s9, 3
    %p26 = por %p24, %p25
    %p27 = scmp.ne.s32.totalorder %s19, %s22
    %p28 = scmp.eq.s32.totalorder %s9, 0
    %p29 = por %p27, %p28
    %p30 = scmp.ne.s32.totalorder %s19, %s22
    %p31 = scmp.eq.s32.totalorder %s14, 3
    %p32 = por %p30, %p31
    %p33 = scmp.ne.s32.totalorder %s22, %s23
    %p34 = scmp.eq.s32.totalorder %s14, 0
    %p35 = por %p33, %p34
    %p36 = scmp.ne.s32.totalorder %s22, %s23
    %p37 = scmp.eq.s32.totalorder %s15, 3
    %p38 = por %p36, %p37
    %p40 = scmp.ne.s32.totalorder %s23, %s39
    %p41 = scmp.eq.s32.totalorder %s15, 0
    %p42 = por %p40, %p41
    %s43 = ssub.s32 %s9, %s16
    %p44 = scmp.eq.s32.totalorder %s43, 0
    %s46 = sadd.s32 %s45, 1
    %s47 = scalar_select %p44, %s45, %s46
    %p50 = pneg %p44
    %p51 = scmp.eq.s32.totalorder %s9, 3
    %p52 = por %p50, %p51
    %p53 = scmp.ne.s32.totalorder %s45, %s48
    %p54 = scmp.eq.s32.totalorder %s9, 0
    %p55 = por %p53, %p54
    %p56 = scmp.ne.s32.totalorder %s45, %s48
    %p57 = scmp.eq.s32.totalorder %s14, 3
    %p58 = por %p56, %p57
    %p59 = scmp.ne.s32.totalorder %s48, %s49
    %p60 = scmp.eq.s32.totalorder %s14, 0
    %p61 = por %p59, %p60
    %p62 = scmp.ne.s32.totalorder %s48, %s49
    %p63 = scmp.eq.s32.totalorder %s15, 3
    %p64 = por %p62, %p63
    %p66 = scmp.ne.s32.totalorder %s49, %s65
    %p67 = scmp.eq.s32.totalorder %s15, 0
    %p68 = por %p66, %p67
    %s69 = ssub.s32 %s9, %s16
    %p70 = scmp.eq.s32.totalorder %s69, 0
    %s72 = sadd.s32 %s71, 1
    %s73 = scalar_select %p70, %s71, %s72
    %p76 = pneg %p70
    %p77 = scmp.eq.s32.totalorder %s9, 3
    %p78 = por %p76, %p77
    %p79 = scmp.ne.s32.totalorder %s71, %s74
    %p80 = scmp.eq.s32.totalorder %s9, 0
    %p81 = por %p79, %p80
    %p82 = scmp.ne.s32.totalorder %s71, %s74
    %p83 = scmp.eq.s32.totalorder %s14, 3
    %p84 = por %p82, %p83
    %p85 = scmp.ne.s32.totalorder %s74, %s75
    %p86 = scmp.eq.s32.totalorder %s14, 0
    %p87 = por %p85, %p86
    %p88 = scmp.ne.s32.totalorder %s74, %s75
    %p89 = scmp.eq.s32.totalorder %s15, 3
    %p90 = por %p88, %p89
    %p92 = scmp.ne.s32.totalorder %s75, %s91
    %p93 = scmp.eq.s32.totalorder %s15, 0
    %p94 = por %p92, %p93
    %s95 = ssub.s32 %s9, %s16
    %p96 = scmp.eq.s32.totalorder %s95, 0
    %s98 = sadd.s32 %s97, 1
    %s99 = scalar_select %p96, %s97, %s98
    %p102 = pneg %p96
    %p103 = scmp.eq.s32.totalorder %s9, 3
    %p104 = por %p102, %p103
    %p105 = scmp.ne.s32.totalorder %s97, %s100
    %p106 = scmp.eq.s32.totalorder %s9, 0
    %p107 = por %p105, %p106
    %p108 = scmp.ne.s32.totalorder %s97, %s100
    %p109 = scmp.eq.s32.totalorder %s14, 3
    %p110 = por %p108, %p109
    %p111 = scmp.ne.s32.totalorder %s100, %s101
    %p112 = scmp.eq.s32.totalorder %s14, 0
    %p113 = por %p111, %p112
    %p114 = scmp.ne.s32.totalorder %s100, %s101
    %p115 = scmp.eq.s32.totalorder %s15, 3
    %p116 = por %p114, %p115
    %p118 = scmp.ne.s32.totalorder %s101, %s117
    %p119 = scmp.eq.s32.totalorder %s15, 0
    %p120 = por %p118, %p119
    %p121 = scmp.le.s32.totalorder 1, %s9
    %p122 = scmp.lt.s32.totalorder %s9, 5
    %p123 = pnand %p121, %p122
    %p124 = pneg %p123
    // Predicated region
    $region9: #{tpu_custom_call.1} parent=5 // pred_check
      _
    $region10: #{tpu_custom_call.1} parent=5 // pred_check_branch
      %126 = sbr.rel (%p123) target = $region12
    $region11: #{tpu_custom_call.1} parent=5 // pred_region
      %s127 = ssub.s32 %s9, 1
    $region12: #{tpu_custom_call.1} parent=5 // pred_fallthru
      _
    %p128 = scmp.lt.s32.totalorder %s9, 4
    // Predicated region
    $region13: #{tpu_custom_call.1} parent=5 // pred_check
      %p129 = pneg %p128
    $region14: #{tpu_custom_call.1} parent=5 // pred_check_branch
      %131 = sbr.rel (%p129) target = $region16
    $region15: #{tpu_custom_call.1} parent=5 // pred_region
      // Predicated region
      $region17: #{tpu_custom_call.1} parent=15 // pred_check
        %p132 = pneg %p29
      $region18: #{tpu_custom_call.1} parent=15 // pred_check_branch
        %134 = sbr.rel (%p132) target = $region20
      $region19: #{tpu_custom_call.1} parent=15 // pred_region
        %s135 = smul.u32 16, %s9
        %p136 = scmp.lt.s32.totalorder %s135, 63
        %s137 = scalar_select %p136, %s135, 63
        %s138 = smul.addr %s137, 7
        %s139 = smul.addr %s138, 8
        %s140 = scalar_lea.vmem %s0, %s139
        %s141 = smul.u32 16, %s9
      $region20: #{tpu_custom_call.1} parent=15 // pred_fallthru
        _
      // Predicated region
      $region21: #{tpu_custom_call.1} parent=15 // pred_check
        %p142 = pneg %p55
      $region22: #{tpu_custom_call.1} parent=15 // pred_check_branch
        %144 = sbr.rel (%p142) target = $region24
      $region23: #{tpu_custom_call.1} parent=15 // pred_region
        %s145 = smul.u32 16, %s9
        %p146 = scmp.lt.s32.totalorder %s145, 63
        %s147 = scalar_select %p146, %s145, 63
        %s148 = smul.addr %s147, 8
        %s149 = scalar_lea.vmem %s1, %s148
        %s150 = smul.u32 16, %s9
      $region24: #{tpu_custom_call.1} parent=15 // pred_fallthru
        _
      // Predicated region
      $region25: #{tpu_custom_call.1} parent=15 // pred_check
        %p151 = pneg %p81
      $region26: #{tpu_custom_call.1} parent=15 // pred_check_branch
        %153 = sbr.rel (%p151) target = $region28
      $region27: #{tpu_custom_call.1} parent=15 // pred_region
        %s154 = smul.u32 16, %s9
        %p155 = scmp.lt.s32.totalorder %s154, 63
        %s156 = scalar_select %p155, %s154, 63
        %s157 = smul.addr %s156, 8
        %s158 = scalar_lea.vmem %s2, %s157
        %s159 = smul.u32 16, %s9
      $region28: #{tpu_custom_call.1} parent=15 // pred_fallthru
        _
    $region16: #{tpu_custom_call.1} parent=5 // pred_fallthru
      _
    %p160 = scmp.le.s32.totalorder 1, %s9
    %p161 = scmp.lt.s32.totalorder %s9, 5
    %p162 = pnand %p160, %p161
    %p163 = pneg %p162
    // Predicated region
    $region29: #{tpu_custom_call.1} parent=5 // pred_check
      _
    $region30: #{tpu_custom_call.1} parent=5 // pred_check_branch
      %165 = sbr.rel (%p162) target = $region32
    $region31: #{tpu_custom_call.1} parent=5 // pred_region
      %s166 = ssub.s32 %s9, 1
      %s167 = smul.u32 16, %s14
      %p168 = scmp.lt.s32.totalorder %s167, 63
      %s169 = scalar_select %p168, %s167, 63
      %s170 = smul.addr %s169, 7
      %s171 = smul.addr %s170, 8
      %s172 = scalar_lea.vmem %s0, %s171
      %p173 = pneg %p35
      %p174 = pneg %p32
      %s175 = smul.u32 16, %s14
      %p176 = scmp.lt.s32.totalorder %s175, 63
      %s177 = scalar_select %p176, %s175, 63
      %s178 = smul.addr %s177, 8
      %s179 = scalar_lea.vmem %s1, %s178
      %p180 = pneg %p61
      %p181 = pneg %p58
      %s182 = smul.u32 16, %s14
      %p183 = scmp.lt.s32.totalorder %s182, 63
      %s184 = scalar_select %p183, %s182, 63
      %s185 = smul.addr %s184, 8
      %s186 = scalar_lea.vmem %s2, %s185
      %p187 = pneg %p87
      %p188 = pneg %p84
      %p189 = pneg %p113
      %p190 = pneg %p110
      %s191 = smul.u32 16, %s14
      %p192 = scmp.lt.s32.totalorder %s191, 63
      %s193 = scalar_select %p192, %s191, 63
      %s194 = smul.addr %s193, 7
      %s195 = smul.addr %s194, 8
      %s196 = scalar_lea.vmem %s3, %s195
      %s197 = smul.u32 16, %s14
      %p198 = scmp.lt.s32.totalorder %s197, 63
      %s199 = scalar_select %p198, %s197, 63
      %s200 = smul.addr %s199, 7
      %s201 = smul.addr %s200, 8
      %s202 = scalar_lea.vmem %s0, %s201
      %s203 = smul.u32 16, %s14
      %s204 = smul.u32 16, %s14
      %p205 = scmp.lt.s32.totalorder %s204, 63
      %s206 = scalar_select %p205, %s204, 63
      %s207 = smul.addr %s206, 8
      %s208 = scalar_lea.vmem %s1, %s207
      %s209 = smul.u32 16, %s14
      %s210 = smul.u32 16, %s14
      %p211 = scmp.lt.s32.totalorder %s210, 63
      %s212 = scalar_select %p211, %s210, 63
      %s213 = smul.addr %s212, 8
      %s214 = scalar_lea.vmem %s2, %s213
      %s215 = smul.u32 16, %s14
      %s216 = smul.u32 16, %s14
      %p217 = scmp.lt.s32.totalorder %s216, 63
      %s218 = scalar_select %p217, %s216, 63
      %s219 = smul.addr %s218, 7
      %s220 = smul.addr %s219, 8
      %s221 = scalar_lea.vmem %s3, %s220
      %s222 = smul.u32 16, %s14
      %v223 = vld [vmem:[%s202] sm:$0xff]
      %v224 = vld [vmem:[%s202 + $0x8] sm:$0xff]
      %v225 = vld [vmem:[%s202 + $0x10] sm:$0xff]
      %v226 = vld [vmem:[%s202 + $0x18] sm:$0xff]
      %v227 = vld [vmem:[%s202 + $0x20] sm:$0xff]
      %v228 = vld [vmem:[%s202 + $0x28] sm:$0xff]
      %v229 = vld [vmem:[%s202 + $0x30] sm:$0xff]
      %v230 = vld [vmem:[%s202 + $0x38] sm:$0xff]
      %v231 = vld [vmem:[%s202 + $0x40] sm:$0xff]
      %v232 = vld [vmem:[%s202 + $0x48] sm:$0xff]
      %v233 = vld [vmem:[%s202 + $0x50] sm:$0xff]
      %v234 = vld [vmem:[%s202 + $0x58] sm:$0xff]
      %v235 = vld [vmem:[%s202 + $0x60] sm:$0xff]
      %v236 = vld [vmem:[%s202 + $0x68] sm:$0xff]
      %v237 = vld [vmem:[%s202 + $0x70] sm:$0xff]
      %v238 = vld [vmem:[%s202 + $0x78] sm:$0xff]
      %v239 = vld [vmem:[%s202 + $0x80] sm:$0xff]
      %v240 = vld [vmem:[%s202 + $0x88] sm:$0xff]
      %v241 = vld [vmem:[%s202 + $0x90] sm:$0xff]
      %v242 = vld [vmem:[%s202 + $0x98] sm:$0xff]
      %v243 = vld [vmem:[%s202 + $0xa0] sm:$0xff]
      %v244 = vld [vmem:[%s202 + $0xa8] sm:$0xff]
      %v245 = vld [vmem:[%s202 + $0xb0] sm:$0xff]
      %v246 = vld [vmem:[%s202 + $0xb8] sm:$0xff]
      %v247 = vld [vmem:[%s202 + $0xc0] sm:$0xff]
      %v248 = vld [vmem:[%s202 + $0xc8] sm:$0xff]
      %v249 = vld [vmem:[%s202 + $0xd0] sm:$0xff]
      %v250 = vld [vmem:[%s202 + $0xd8] sm:$0xff]
      %v251 = vld [vmem:[%s202 + $0xe0] sm:$0xff]
      %v252 = vld [vmem:[%s202 + $0xe8] sm:$0xff]
      %v253 = vld [vmem:[%s202 + $0xf0] sm:$0xff]
      %v254 = vld [vmem:[%s202 + $0xf8] sm:$0xff]
      %v255 = vld [vmem:[%s202 + $0x100] sm:$0xff]
      %v256 = vld [vmem:[%s202 + $0x108] sm:$0xff]
      %v257 = vld [vmem:[%s202 + $0x110] sm:$0xff]
      %v258 = vld [vmem:[%s202 + $0x118] sm:$0xff]
      %v259 = vld [vmem:[%s202 + $0x120] sm:$0xff]
      %v260 = vld [vmem:[%s202 + $0x128] sm:$0xff]
      %v261 = vld [vmem:[%s202 + $0x130] sm:$0xff]
      %v262 = vld [vmem:[%s202 + $0x138] sm:$0xff]
      %v263 = vld [vmem:[%s202 + $0x140] sm:$0xff]
      %v264 = vld [vmem:[%s202 + $0x148] sm:$0xff]
      %v265 = vld [vmem:[%s202 + $0x150] sm:$0xff]
      %v266 = vld [vmem:[%s202 + $0x158] sm:$0xff]
      %v267 = vld [vmem:[%s202 + $0x160] sm:$0xff]
      %v268 = vld [vmem:[%s202 + $0x168] sm:$0xff]
      %v269 = vld [vmem:[%s202 + $0x170] sm:$0xff]
      %v270 = vld [vmem:[%s202 + $0x178] sm:$0xff]
      %v271 = vld [vmem:[%s202 + $0x180] sm:$0xff]
      %v272 = vld [vmem:[%s202 + $0x188] sm:$0xff]
      %v273 = vld [vmem:[%s202 + $0x190] sm:$0xff]
      %v274 = vld [vmem:[%s202 + $0x198] sm:$0xff]
      %v275 = vld [vmem:[%s202 + $0x1a0] sm:$0xff]
      %v276 = vld [vmem:[%s202 + $0x1a8] sm:$0xff]
      %v277 = vld [vmem:[%s202 + $0x1b0] sm:$0xff]
      %v278 = vld [vmem:[%s202 + $0x1b8] sm:$0xff]
      %v279 = vld [vmem:[%s202 + $0x1c0] sm:$0xff]
      %v280 = vld [vmem:[%s202 + $0x1c8] sm:$0xff]
      %v281 = vld [vmem:[%s202 + $0x1d0] sm:$0xff]
      %v282 = vld [vmem:[%s202 + $0x1d8] sm:$0xff]
      %v283 = vld [vmem:[%s202 + $0x1e0] sm:$0xff]
      %v284 = vld [vmem:[%s202 + $0x1e8] sm:$0xff]
      %v285 = vld [vmem:[%s202 + $0x1f0] sm:$0xff]
      %v286 = vld [vmem:[%s202 + $0x1f8] sm:$0xff]
      %v287 = vld [vmem:[%s202 + $0x200] sm:$0xff]
      %v288 = vld [vmem:[%s202 + $0x208] sm:$0xff]
      %v289 = vld [vmem:[%s202 + $0x210] sm:$0xff]
      %v290 = vld [vmem:[%s202 + $0x218] sm:$0xff]
      %v291 = vld [vmem:[%s202 + $0x220] sm:$0xff]
      %v292 = vld [vmem:[%s202 + $0x228] sm:$0xff]
      %v293 = vld [vmem:[%s202 + $0x230] sm:$0xff]
      %v294 = vld [vmem:[%s202 + $0x238] sm:$0xff]
      %v295 = vld [vmem:[%s202 + $0x240] sm:$0xff]
      %v296 = vld [vmem:[%s202 + $0x248] sm:$0xff]
      %v297 = vld [vmem:[%s202 + $0x250] sm:$0xff]
      %v298 = vld [vmem:[%s202 + $0x258] sm:$0xff]
      %v299 = vld [vmem:[%s202 + $0x260] sm:$0xff]
      %v300 = vld [vmem:[%s202 + $0x268] sm:$0xff]
      %v301 = vld [vmem:[%s202 + $0x270] sm:$0xff]
      %v302 = vld [vmem:[%s202 + $0x278] sm:$0xff]
      %v303 = vld [vmem:[%s202 + $0x280] sm:$0xff]
      %v304 = vld [vmem:[%s202 + $0x288] sm:$0xff]
      %v305 = vld [vmem:[%s202 + $0x290] sm:$0xff]
      %v306 = vld [vmem:[%s202 + $0x298] sm:$0xff]
      %v307 = vld [vmem:[%s202 + $0x2a0] sm:$0xff]
      %v308 = vld [vmem:[%s202 + $0x2a8] sm:$0xff]
      %v309 = vld [vmem:[%s202 + $0x2b0] sm:$0xff]
      %v310 = vld [vmem:[%s202 + $0x2b8] sm:$0xff]
      %v311 = vld [vmem:[%s202 + $0x2c0] sm:$0xff]
      %v312 = vld [vmem:[%s202 + $0x2c8] sm:$0xff]
      %v313 = vld [vmem:[%s202 + $0x2d0] sm:$0xff]
      %v314 = vld [vmem:[%s202 + $0x2d8] sm:$0xff]
      %v315 = vld [vmem:[%s202 + $0x2e0] sm:$0xff]
      %v316 = vld [vmem:[%s202 + $0x2e8] sm:$0xff]
      %v317 = vld [vmem:[%s202 + $0x2f0] sm:$0xff]
      %v318 = vld [vmem:[%s202 + $0x2f8] sm:$0xff]
      %v319 = vld [vmem:[%s202 + $0x300] sm:$0xff]
      %v320 = vld [vmem:[%s202 + $0x308] sm:$0xff]
      %v321 = vld [vmem:[%s202 + $0x310] sm:$0xff]
      %v322 = vld [vmem:[%s202 + $0x318] sm:$0xff]
      %v323 = vld [vmem:[%s202 + $0x320] sm:$0xff]
      %v324 = vld [vmem:[%s202 + $0x328] sm:$0xff]
      %v325 = vld [vmem:[%s202 + $0x330] sm:$0xff]
      %v326 = vld [vmem:[%s202 + $0x338] sm:$0xff]
      %v327 = vld [vmem:[%s202 + $0x340] sm:$0xff]
      %v328 = vld [vmem:[%s202 + $0x348] sm:$0xff]
      %v329 = vld [vmem:[%s202 + $0x350] sm:$0xff]
      %v330 = vld [vmem:[%s202 + $0x358] sm:$0xff]
      %v331 = vld [vmem:[%s202 + $0x360] sm:$0xff]
      %v332 = vld [vmem:[%s202 + $0x368] sm:$0xff]
      %v333 = vld [vmem:[%s202 + $0x370] sm:$0xff]
      %v334 = vld [vmem:[%s202 + $0x378] sm:$0xff]
      %v335 = vadd.f32 %v223, %v224
      %v336 = vadd.f32 %v335, %v225
      %v337 = vadd.f32 %v336, %v226
      %v338 = vadd.f32 %v337, %v227
      %v339 = vadd.f32 %v338, %v228
      %vm340 = vcmask 130048
      %v341 = vsel %vm340, %v229, 0.0
      %v342 = vadd.f32 %v339, %v341
      %343 = vadd.xlane.f32.xlu0 %v342
      %v344 = vpop.xlane.xlu0 %343
      %v345 = vadd.f32 %v230, %v231
      %v346 = vadd.f32 %v345, %v232
      %v347 = vadd.f32 %v346, %v233
      %v348 = vadd.f32 %v347, %v234
      %v349 = vadd.f32 %v348, %v235
      %v350 = vsel %vm340, %v236, 0.0
      %v351 = vadd.f32 %v349, %v350
      %352 = vadd.xlane.f32.xlu0 %v351
      %v353 = vpop.xlane.xlu0 %352
      %v354 = vadd.f32 %v237, %v238
      %v355 = vadd.f32 %v354, %v239
      %v356 = vadd.f32 %v355, %v240
      %v357 = vadd.f32 %v356, %v241
      %v358 = vadd.f32 %v357, %v242
      %v359 = vsel %vm340, %v243, 0.0
      %v360 = vadd.f32 %v358, %v359
      %361 = vadd.xlane.f32.xlu0 %v360
      %v362 = vpop.xlane.xlu0 %361
      %v363 = vadd.f32 %v244, %v245
      %v364 = vadd.f32 %v363, %v246
      %v365 = vadd.f32 %v364, %v247
      %v366 = vadd.f32 %v365, %v248
      %v367 = vadd.f32 %v366, %v249
      %v368 = vsel %vm340, %v250, 0.0
      %v369 = vadd.f32 %v367, %v368
      %370 = vadd.xlane.f32.xlu0 %v369
      %v371 = vpop.xlane.xlu0 %370
      %v372 = vadd.f32 %v251, %v252
      %v373 = vadd.f32 %v372, %v253
      %v374 = vadd.f32 %v373, %v254
      %v375 = vadd.f32 %v374, %v255
      %v376 = vadd.f32 %v375, %v256
      %v377 = vsel %vm340, %v257, 0.0
      %v378 = vadd.f32 %v376, %v377
      %379 = vadd.xlane.f32.xlu0 %v378
      %v380 = vpop.xlane.xlu0 %379
      %v381 = vadd.f32 %v258, %v259
      %v382 = vadd.f32 %v381, %v260
      %v383 = vadd.f32 %v382, %v261
      %v384 = vadd.f32 %v383, %v262
      %v385 = vadd.f32 %v384, %v263
      %v386 = vsel %vm340, %v264, 0.0
      %v387 = vadd.f32 %v385, %v386
      %388 = vadd.xlane.f32.xlu0 %v387
      %v389 = vpop.xlane.xlu0 %388
      %v390 = vadd.f32 %v265, %v266
      %v391 = vadd.f32 %v390, %v267
      %v392 = vadd.f32 %v391, %v268
      %v393 = vadd.f32 %v392, %v269
      %v394 = vadd.f32 %v393, %v270
      %v395 = vsel %vm340, %v271, 0.0
      %v396 = vadd.f32 %v394, %v395
      %397 = vadd.xlane.f32.xlu0 %v396
      %v398 = vpop.xlane.xlu0 %397
      %v399 = vadd.f32 %v272, %v273
      %v400 = vadd.f32 %v399, %v274
      %v401 = vadd.f32 %v400, %v275
      %v402 = vadd.f32 %v401, %v276
      %v403 = vadd.f32 %v402, %v277
      %v404 = vsel %vm340, %v278, 0.0
      %v405 = vadd.f32 %v403, %v404
      %406 = vadd.xlane.f32.xlu0 %v405
      %v407 = vpop.xlane.xlu0 %406
      %v408 = vadd.f32 %v279, %v280
      %v409 = vadd.f32 %v408, %v281
      %v410 = vadd.f32 %v409, %v282
      %v411 = vadd.f32 %v410, %v283
      %v412 = vadd.f32 %v411, %v284
      %v413 = vsel %vm340, %v285, 0.0
      %v414 = vadd.f32 %v412, %v413
      %415 = vadd.xlane.f32.xlu0 %v414
      %v416 = vpop.xlane.xlu0 %415
      %v417 = vadd.f32 %v286, %v287
      %v418 = vadd.f32 %v417, %v288
      %v419 = vadd.f32 %v418, %v289
      %v420 = vadd.f32 %v419, %v290
      %v421 = vadd.f32 %v420, %v291
      %v422 = vsel %vm340, %v292, 0.0
      %v423 = vadd.f32 %v421, %v422
      %424 = vadd.xlane.f32.xlu0 %v423
      %v425 = vpop.xlane.xlu0 %424
      %v426 = vadd.f32 %v293, %v294
      %v427 = vadd.f32 %v426, %v295
      %v428 = vadd.f32 %v427, %v296
      %v429 = vadd.f32 %v428, %v297
      %v430 = vadd.f32 %v429, %v298
      %v431 = vsel %vm340, %v299, 0.0
      %v432 = vadd.f32 %v430, %v431
      %433 = vadd.xlane.f32.xlu0 %v432
      %v434 = vpop.xlane.xlu0 %433
      %v435 = vadd.f32 %v300, %v301
      %v436 = vadd.f32 %v435, %v302
      %v437 = vadd.f32 %v436, %v303
      %v438 = vadd.f32 %v437, %v304
      %v439 = vadd.f32 %v438, %v305
      %v440 = vsel %vm340, %v306, 0.0
      %v441 = vadd.f32 %v439, %v440
      %442 = vadd.xlane.f32.xlu0 %v441
      %v443 = vpop.xlane.xlu0 %442
      %v444 = vadd.f32 %v307, %v308
      %v445 = vadd.f32 %v444, %v309
      %v446 = vadd.f32 %v445, %v310
      %v447 = vadd.f32 %v446, %v311
      %v448 = vadd.f32 %v447, %v312
      %v449 = vsel %vm340, %v313, 0.0
      %v450 = vadd.f32 %v448, %v449
      %451 = vadd.xlane.f32.xlu0 %v450
      %v452 = vpop.xlane.xlu0 %451
      %v453 = vadd.f32 %v314, %v315
      %v454 = vadd.f32 %v453, %v316
      %v455 = vadd.f32 %v454, %v317
      %v456 = vadd.f32 %v455, %v318
      %v457 = vadd.f32 %v456, %v319
      %v458 = vsel %vm340, %v320, 0.0
      %v459 = vadd.f32 %v457, %v458
      %460 = vadd.xlane.f32.xlu0 %v459
      %v461 = vpop.xlane.xlu0 %460
      %v462 = vadd.f32 %v321, %v322
      %v463 = vadd.f32 %v462, %v323
      %v464 = vadd.f32 %v463, %v324
      %v465 = vadd.f32 %v464, %v325
      %v466 = vadd.f32 %v465, %v326
      %v467 = vsel %vm340, %v327, 0.0
      %v468 = vadd.f32 %v466, %v467
      %469 = vadd.xlane.f32.xlu0 %v468
      %v470 = vpop.xlane.xlu0 %469
      %v471 = vadd.f32 %v328, %v329
      %v472 = vadd.f32 %v471, %v330
      %v473 = vadd.f32 %v472, %v331
      %v474 = vadd.f32 %v473, %v332
      %v475 = vadd.f32 %v474, %v333
      %v476 = vsel %vm340, %v334, 0.0
      %v477 = vadd.f32 %v475, %v476
      %478 = vadd.xlane.f32.xlu0 %v477
      %v479 = vpop.xlane.xlu0 %478
      %v480 = vmul.f32 %v344, 0.0012755102
      %v481 = vmul.f32 %v353, 0.0012755102
      %v482 = vmul.f32 %v362, 0.0012755102
      %v483 = vmul.f32 %v371, 0.0012755102
      %v484 = vmul.f32 %v380, 0.0012755102
      %v485 = vmul.f32 %v389, 0.0012755102
      %v486 = vmul.f32 %v398, 0.0012755102
      %v487 = vmul.f32 %v407, 0.0012755102
      %v488 = vmul.f32 %v416, 0.0012755102
      %v489 = vmul.f32 %v425, 0.0012755102
      %v490 = vmul.f32 %v434, 0.0012755102
      %v491 = vmul.f32 %v443, 0.0012755102
      %v492 = vmul.f32 %v452, 0.0012755102
      %v493 = vmul.f32 %v461, 0.0012755102
      %v494 = vmul.f32 %v470, 0.0012755102
      %v495 = vmul.f32 %v479, 0.0012755102
      %v496 = vsub.f32 %v223, %v480
      %v497 = vsub.f32 %v224, %v480
      %v498 = vsub.f32 %v225, %v480
      %v499 = vsub.f32 %v226, %v480
      %v500 = vsub.f32 %v227, %v480
      %v501 = vsub.f32 %v228, %v480
      %v502 = vsub.f32 %v229, %v480
      %v503 = vsub.f32 %v230, %v481
      %v504 = vsub.f32 %v231, %v481
      %v505 = vsub.f32 %v232, %v481
      %v506 = vsub.f32 %v233, %v481
      %v507 = vsub.f32 %v234, %v481
      %v508 = vsub.f32 %v235, %v481
      %v509 = vsub.f32 %v236, %v481
      %v510 = vsub.f32 %v237, %v482
      %v511 = vsub.f32 %v238, %v482
      %v512 = vsub.f32 %v239, %v482
      %v513 = vsub.f32 %v240, %v482
      %v514 = vsub.f32 %v241, %v482
      %v515 = vsub.f32 %v242, %v482
      %v516 = vsub.f32 %v243, %v482
      %v517 = vsub.f32 %v244, %v483
      %v518 = vsub.f32 %v245, %v483
      %v519 = vsub.f32 %v246, %v483
      %v520 = vsub.f32 %v247, %v483
      %v521 = vsub.f32 %v248, %v483
      %v522 = vsub.f32 %v249, %v483
      %v523 = vsub.f32 %v250, %v483
      %v524 = vsub.f32 %v251, %v484
      %v525 = vsub.f32 %v252, %v484
      %v526 = vsub.f32 %v253, %v484
      %v527 = vsub.f32 %v254, %v484
      %v528 = vsub.f32 %v255, %v484
      %v529 = vsub.f32 %v256, %v484
      %v530 = vsub.f32 %v257, %v484
      %v531 = vsub.f32 %v258, %v485
      %v532 = vsub.f32 %v259, %v485
      %v533 = vsub.f32 %v260, %v485
      %v534 = vsub.f32 %v261, %v485
      %v535 = vsub.f32 %v262, %v485
      %v536 = vsub.f32 %v263, %v485
      %v537 = vsub.f32 %v264, %v485
      %v538 = vsub.f32 %v265, %v486
      %v539 = vsub.f32 %v266, %v486
      %v540 = vsub.f32 %v267, %v486
      %v541 = vsub.f32 %v268, %v486
      %v542 = vsub.f32 %v269, %v486
      %v543 = vsub.f32 %v270, %v486
      %v544 = vsub.f32 %v271, %v486
      %v545 = vsub.f32 %v272, %v487
      %v546 = vsub.f32 %v273, %v487
      %v547 = vsub.f32 %v274, %v487
      %v548 = vsub.f32 %v275, %v487
      %v549 = vsub.f32 %v276, %v487
      %v550 = vsub.f32 %v277, %v487
      %v551 = vsub.f32 %v278, %v487
      %v552 = vsub.f32 %v279, %v488
      %v553 = vsub.f32 %v280, %v488
      %v554 = vsub.f32 %v281, %v488
      %v555 = vsub.f32 %v282, %v488
      %v556 = vsub.f32 %v283, %v488
      %v557 = vsub.f32 %v284, %v488
      %v558 = vsub.f32 %v285, %v488
      %v559 = vsub.f32 %v286, %v489
      %v560 = vsub.f32 %v287, %v489
      %v561 = vsub.f32 %v288, %v489
      %v562 = vsub.f32 %v289, %v489
      %v563 = vsub.f32 %v290, %v489
      %v564 = vsub.f32 %v291, %v489
      %v565 = vsub.f32 %v292, %v489
      %v566 = vsub.f32 %v293, %v490
      %v567 = vsub.f32 %v294, %v490
      %v568 = vsub.f32 %v295, %v490
      %v569 = vsub.f32 %v296, %v490
      %v570 = vsub.f32 %v297, %v490
      %v571 = vsub.f32 %v298, %v490
      %v572 = vsub.f32 %v299, %v490
      %v573 = vsub.f32 %v300, %v491
      %v574 = vsub.f32 %v301, %v491
      %v575 = vsub.f32 %v302, %v491
      %v576 = vsub.f32 %v303, %v491
      %v577 = vsub.f32 %v304, %v491
      %v578 = vsub.f32 %v305, %v491
      %v579 = vsub.f32 %v306, %v491
      %v580 = vsub.f32 %v307, %v492
      %v581 = vsub.f32 %v308, %v492
      %v582 = vsub.f32 %v309, %v492
      %v583 = vsub.f32 %v310, %v492
      %v584 = vsub.f32 %v311, %v492
      %v585 = vsub.f32 %v312, %v492
      %v586 = vsub.f32 %v313, %v492
      %v587 = vsub.f32 %v314, %v493
      %v588 = vsub.f32 %v315, %v493
      %v589 = vsub.f32 %v316, %v493
      %v590 = vsub.f32 %v317, %v493
      %v591 = vsub.f32 %v318, %v493
      %v592 = vsub.f32 %v319, %v493
      %v593 = vsub.f32 %v320, %v493
      %v594 = vsub.f32 %v321, %v494
      %v595 = vsub.f32 %v322, %v494
      %v596 = vsub.f32 %v323, %v494
      %v597 = vsub.f32 %v324, %v494
      %v598 = vsub.f32 %v325, %v494
      %v599 = vsub.f32 %v326, %v494
      %v600 = vsub.f32 %v327, %v494
      %v601 = vsub.f32 %v328, %v495
      %v602 = vsub.f32 %v329, %v495
      %v603 = vsub.f32 %v330, %v495
      %v604 = vsub.f32 %v331, %v495
      %v605 = vsub.f32 %v332, %v495
      %v606 = vsub.f32 %v333, %v495
      %v607 = vsub.f32 %v334, %v495
      %v608 = vmul.f32 %v496, %v496
      %v609 = vmul.f32 %v497, %v497
      %v610 = vmul.f32 %v498, %v498
      %v611 = vmul.f32 %v499, %v499
      %v612 = vmul.f32 %v500, %v500
      %v613 = vmul.f32 %v501, %v501
      %v614 = vmul.f32 %v502, %v502
      %v615 = vmul.f32 %v503, %v503
      %v616 = vmul.f32 %v504, %v504
      %v617 = vmul.f32 %v505, %v505
      %v618 = vmul.f32 %v506, %v506
      %v619 = vmul.f32 %v507, %v507
      %v620 = vmul.f32 %v508, %v508
      %v621 = vmul.f32 %v509, %v509
      %v622 = vmul.f32 %v510, %v510
      %v623 = vmul.f32 %v511, %v511
      %v624 = vmul.f32 %v512, %v512
      %v625 = vmul.f32 %v513, %v513
      %v626 = vmul.f32 %v514, %v514
      %v627 = vmul.f32 %v515, %v515
      %v628 = vmul.f32 %v516, %v516
      %v629 = vmul.f32 %v517, %v517
      %v630 = vmul.f32 %v518, %v518
      %v631 = vmul.f32 %v519, %v519
      %v632 = vmul.f32 %v520, %v520
      %v633 = vmul.f32 %v521, %v521
      %v634 = vmul.f32 %v522, %v522
      %v635 = vmul.f32 %v523, %v523
      %v636 = vmul.f32 %v524, %v524
      %v637 = vmul.f32 %v525, %v525
      %v638 = vmul.f32 %v526, %v526
      %v639 = vmul.f32 %v527, %v527
      %v640 = vmul.f32 %v528, %v528
      %v641 = vmul.f32 %v529, %v529
      %v642 = vmul.f32 %v530, %v530
      %v643 = vmul.f32 %v531, %v531
      %v644 = vmul.f32 %v532, %v532
      %v645 = vmul.f32 %v533, %v533
      %v646 = vmul.f32 %v534, %v534
      %v647 = vmul.f32 %v535, %v535
      %v648 = vmul.f32 %v536, %v536
      %v649 = vmul.f32 %v537, %v537
      %v650 = vmul.f32 %v538, %v538
      %v651 = vmul.f32 %v539, %v539
      %v652 = vmul.f32 %v540, %v540
      %v653 = vmul.f32 %v541, %v541
      %v654 = vmul.f32 %v542, %v542
      %v655 = vmul.f32 %v543, %v543
      %v656 = vmul.f32 %v544, %v544
      %v657 = vmul.f32 %v545, %v545
      %v658 = vmul.f32 %v546, %v546
      %v659 = vmul.f32 %v547, %v547
      %v660 = vmul.f32 %v548, %v548
      %v661 = vmul.f32 %v549, %v549
      %v662 = vmul.f32 %v550, %v550
      %v663 = vmul.f32 %v551, %v551
      %v664 = vmul.f32 %v552, %v552
      %v665 = vmul.f32 %v553, %v553
      %v666 = vmul.f32 %v554, %v554
      %v667 = vmul.f32 %v555, %v555
      %v668 = vmul.f32 %v556, %v556
      %v669 = vmul.f32 %v557, %v557
      %v670 = vmul.f32 %v558, %v558
      %v671 = vmul.f32 %v559, %v559
      %v672 = vmul.f32 %v560, %v560
      %v673 = vmul.f32 %v561, %v561
      %v674 = vmul.f32 %v562, %v562
      %v675 = vmul.f32 %v563, %v563
      %v676 = vmul.f32 %v564, %v564
      %v677 = vmul.f32 %v565, %v565
      %v678 = vmul.f32 %v566, %v566
      %v679 = vmul.f32 %v567, %v567
      %v680 = vmul.f32 %v568, %v568
      %v681 = vmul.f32 %v569, %v569
      %v682 = vmul.f32 %v570, %v570
      %v683 = vmul.f32 %v571, %v571
      %v684 = vmul.f32 %v572, %v572
      %v685 = vmul.f32 %v573, %v573
      %v686 = vmul.f32 %v574, %v574
      %v687 = vmul.f32 %v575, %v575
      %v688 = vmul.f32 %v576, %v576
      %v689 = vmul.f32 %v577, %v577
      %v690 = vmul.f32 %v578, %v578
      %v691 = vmul.f32 %v579, %v579
      %v692 = vmul.f32 %v580, %v580
      %v693 = vmul.f32 %v581, %v581
      %v694 = vmul.f32 %v582, %v582
      %v695 = vmul.f32 %v583, %v583
      %v696 = vmul.f32 %v584, %v584
      %v697 = vmul.f32 %v585, %v585
      %v698 = vmul.f32 %v586, %v586
      %v699 = vmul.f32 %v587, %v587
      %v700 = vmul.f32 %v588, %v588
      %v701 = vmul.f32 %v589, %v589
      %v702 = vmul.f32 %v590, %v590
      %v703 = vmul.f32 %v591, %v591
      %v704 = vmul.f32 %v592, %v592
      %v705 = vmul.f32 %v593, %v593
      %v706 = vmul.f32 %v594, %v594
      %v707 = vmul.f32 %v595, %v595
      %v708 = vmul.f32 %v596, %v596
      %v709 = vmul.f32 %v597, %v597
      %v710 = vmul.f32 %v598, %v598
      %v711 = vmul.f32 %v599, %v599
      %v712 = vmul.f32 %v600, %v600
      %v713 = vmul.f32 %v601, %v601
      %v714 = vmul.f32 %v602, %v602
      %v715 = vmul.f32 %v603, %v603
      %v716 = vmul.f32 %v604, %v604
      %v717 = vmul.f32 %v605, %v605
      %v718 = vmul.f32 %v606, %v606
      %v719 = vmul.f32 %v607, %v607
      %v720 = vadd.f32 %v608, %v609
      %v721 = vadd.f32 %v720, %v610
      %v722 = vadd.f32 %v721, %v611
      %v723 = vadd.f32 %v722, %v612
      %v724 = vadd.f32 %v723, %v613
      %v725 = vsel %vm340, %v614, 0.0
      %v726 = vadd.f32 %v724, %v725
      %727 = vadd.xlane.f32.xlu0 %v726
      %v728 = vpop.xlane.xlu0 %727
      %v729 = vadd.f32 %v615, %v616
      %v730 = vadd.f32 %v729, %v617
      %v731 = vadd.f32 %v730, %v618
      %v732 = vadd.f32 %v731, %v619
      %v733 = vadd.f32 %v732, %v620
      %v734 = vsel %vm340, %v621, 0.0
      %v735 = vadd.f32 %v733, %v734
      %736 = vadd.xlane.f32.xlu0 %v735
      %v737 = vpop.xlane.xlu0 %736
      %v738 = vadd.f32 %v622, %v623
      %v739 = vadd.f32 %v738, %v624
      %v740 = vadd.f32 %v739, %v625
      %v741 = vadd.f32 %v740, %v626
      %v742 = vadd.f32 %v741, %v627
      %v743 = vsel %vm340, %v628, 0.0
      %v744 = vadd.f32 %v742, %v743
      %745 = vadd.xlane.f32.xlu0 %v744
      %v746 = vpop.xlane.xlu0 %745
      %v747 = vadd.f32 %v629, %v630
      %v748 = vadd.f32 %v747, %v631
      %v749 = vadd.f32 %v748, %v632
      %v750 = vadd.f32 %v749, %v633
      %v751 = vadd.f32 %v750, %v634
      %v752 = vsel %vm340, %v635, 0.0
      %v753 = vadd.f32 %v751, %v752
      %754 = vadd.xlane.f32.xlu0 %v753
      %v755 = vpop.xlane.xlu0 %754
      %v756 = vadd.f32 %v636, %v637
      %v757 = vadd.f32 %v756, %v638
      %v758 = vadd.f32 %v757, %v639
      %v759 = vadd.f32 %v758, %v640
      %v760 = vadd.f32 %v759, %v641
      %v761 = vsel %vm340, %v642, 0.0
      %v762 = vadd.f32 %v760, %v761
      %763 = vadd.xlane.f32.xlu0 %v762
      %v764 = vpop.xlane.xlu0 %763
      %v765 = vadd.f32 %v643, %v644
      %v766 = vadd.f32 %v765, %v645
      %v767 = vadd.f32 %v766, %v646
      %v768 = vadd.f32 %v767, %v647
      %v769 = vadd.f32 %v768, %v648
      %v770 = vsel %vm340, %v649, 0.0
      %v771 = vadd.f32 %v769, %v770
      %772 = vadd.xlane.f32.xlu0 %v771
      %v773 = vpop.xlane.xlu0 %772
      %v774 = vadd.f32 %v650, %v651
      %v775 = vadd.f32 %v774, %v652
      %v776 = vadd.f32 %v775, %v653
      %v777 = vadd.f32 %v776, %v654
      %v778 = vadd.f32 %v777, %v655
      %v779 = vsel %vm340, %v656, 0.0
      %v780 = vadd.f32 %v778, %v779
      %781 = vadd.xlane.f32.xlu0 %v780
      %v782 = vpop.xlane.xlu0 %781
      %v783 = vadd.f32 %v657, %v658
      %v784 = vadd.f32 %v783, %v659
      %v785 = vadd.f32 %v784, %v660
      %v786 = vadd.f32 %v785, %v661
      %v787 = vadd.f32 %v786, %v662
      %v788 = vsel %vm340, %v663, 0.0
      %v789 = vadd.f32 %v787, %v788
      %790 = vadd.xlane.f32.xlu0 %v789
      %v791 = vpop.xlane.xlu0 %790
      %v792 = vadd.f32 %v664, %v665
      %v793 = vadd.f32 %v792, %v666
      %v794 = vadd.f32 %v793, %v667
      %v795 = vadd.f32 %v794, %v668
      %v796 = vadd.f32 %v795, %v669
      %v797 = vsel %vm340, %v670, 0.0
      %v798 = vadd.f32 %v796, %v797
      %799 = vadd.xlane.f32.xlu0 %v798
      %v800 = vpop.xlane.xlu0 %799
      %v801 = vadd.f32 %v671, %v672
      %v802 = vadd.f32 %v801, %v673
      %v803 = vadd.f32 %v802, %v674
      %v804 = vadd.f32 %v803, %v675
      %v805 = vadd.f32 %v804, %v676
      %v806 = vsel %vm340, %v677, 0.0
      %v807 = vadd.f32 %v805, %v806
      %808 = vadd.xlane.f32.xlu0 %v807
      %v809 = vpop.xlane.xlu0 %808
      %v810 = vadd.f32 %v678, %v679
      %v811 = vadd.f32 %v810, %v680
      %v812 = vadd.f32 %v811, %v681
      %v813 = vadd.f32 %v812, %v682
      %v814 = vadd.f32 %v813, %v683
      %v815 = vsel %vm340, %v684, 0.0
      %v816 = vadd.f32 %v814, %v815
      %817 = vadd.xlane.f32.xlu0 %v816
      %v818 = vpop.xlane.xlu0 %817
      %v819 = vadd.f32 %v685, %v686
      %v820 = vadd.f32 %v819, %v687
      %v821 = vadd.f32 %v820, %v688
      %v822 = vadd.f32 %v821, %v689
      %v823 = vadd.f32 %v822, %v690
      %v824 = vsel %vm340, %v691, 0.0
      %v825 = vadd.f32 %v823, %v824
      %826 = vadd.xlane.f32.xlu0 %v825
      %v827 = vpop.xlane.xlu0 %826
      %v828 = vadd.f32 %v692, %v693
      %v829 = vadd.f32 %v828, %v694
      %v830 = vadd.f32 %v829, %v695
      %v831 = vadd.f32 %v830, %v696
      %v832 = vadd.f32 %v831, %v697
      %v833 = vsel %vm340, %v698, 0.0
      %v834 = vadd.f32 %v832, %v833
      %835 = vadd.xlane.f32.xlu0 %v834
      %v836 = vpop.xlane.xlu0 %835
      %v837 = vadd.f32 %v699, %v700
      %v838 = vadd.f32 %v837, %v701
      %v839 = vadd.f32 %v838, %v702
      %v840 = vadd.f32 %v839, %v703
      %v841 = vadd.f32 %v840, %v704
      %v842 = vsel %vm340, %v705, 0.0
      %v843 = vadd.f32 %v841, %v842
      %844 = vadd.xlane.f32.xlu0 %v843
      %v845 = vpop.xlane.xlu0 %844
      %v846 = vadd.f32 %v706, %v707
      %v847 = vadd.f32 %v846, %v708
      %v848 = vadd.f32 %v847, %v709
      %v849 = vadd.f32 %v848, %v710
      %v850 = vadd.f32 %v849, %v711
      %v851 = vsel %vm340, %v712, 0.0
      %v852 = vadd.f32 %v850, %v851
      %853 = vadd.xlane.f32.xlu0 %v852
      %v854 = vpop.xlane.xlu0 %853
      %v855 = vadd.f32 %v713, %v714
      %v856 = vadd.f32 %v855, %v715
      %v857 = vadd.f32 %v856, %v716
      %v858 = vadd.f32 %v857, %v717
      %v859 = vadd.f32 %v858, %v718
      %v860 = vsel %vm340, %v719, 0.0
      %v861 = vadd.f32 %v859, %v860
      %862 = vadd.xlane.f32.xlu0 %v861
      %v863 = vpop.xlane.xlu0 %862
      %v864 = vmul.f32 %v728, 0.0012755102
      %v865 = vmul.f32 %v737, 0.0012755102
      %v866 = vmul.f32 %v746, 0.0012755102
      %v867 = vmul.f32 %v755, 0.0012755102
      %v868 = vmul.f32 %v764, 0.0012755102
      %v869 = vmul.f32 %v773, 0.0012755102
      %v870 = vmul.f32 %v782, 0.0012755102
      %v871 = vmul.f32 %v791, 0.0012755102
      %v872 = vmul.f32 %v800, 0.0012755102
      %v873 = vmul.f32 %v809, 0.0012755102
      %v874 = vmul.f32 %v818, 0.0012755102
      %v875 = vmul.f32 %v827, 0.0012755102
      %v876 = vmul.f32 %v836, 0.0012755102
      %v877 = vmul.f32 %v845, 0.0012755102
      %v878 = vmul.f32 %v854, 0.0012755102
      %v879 = vmul.f32 %v863, 0.0012755102
      %v880 = vld [vmem:[%s208] sm:$0xff]
      %v881 = vld [vmem:[%s208 + $0x8] sm:$0xff]
      %v882 = vld [vmem:[%s208 + $0x10] sm:$0xff]
      %v883 = vld [vmem:[%s208 + $0x18] sm:$0xff]
      %v884 = vld [vmem:[%s208 + $0x20] sm:$0xff]
      %v885 = vld [vmem:[%s208 + $0x28] sm:$0xff]
      %v886 = vld [vmem:[%s208 + $0x30] sm:$0xff]
      %v887 = vld [vmem:[%s208 + $0x38] sm:$0xff]
      %v888 = vld [vmem:[%s208 + $0x40] sm:$0xff]
      %v889 = vld [vmem:[%s208 + $0x48] sm:$0xff]
      %v890 = vld [vmem:[%s208 + $0x50] sm:$0xff]
      %v891 = vld [vmem:[%s208 + $0x58] sm:$0xff]
      %v892 = vld [vmem:[%s208 + $0x60] sm:$0xff]
      %v893 = vld [vmem:[%s208 + $0x68] sm:$0xff]
      %v894 = vld [vmem:[%s208 + $0x70] sm:$0xff]
      %v895 = vld [vmem:[%s208 + $0x78] sm:$0xff]
      %v896 = vld [vmem:[%s214] sm:$0xff]
      %v897 = vld [vmem:[%s214 + $0x8] sm:$0xff]
      %v898 = vld [vmem:[%s214 + $0x10] sm:$0xff]
      %v899 = vld [vmem:[%s214 + $0x18] sm:$0xff]
      %v900 = vld [vmem:[%s214 + $0x20] sm:$0xff]
      %v901 = vld [vmem:[%s214 + $0x28] sm:$0xff]
      %v902 = vld [vmem:[%s214 + $0x30] sm:$0xff]
      %v903 = vld [vmem:[%s214 + $0x38] sm:$0xff]
      %v904 = vld [vmem:[%s214 + $0x40] sm:$0xff]
      %v905 = vld [vmem:[%s214 + $0x48] sm:$0xff]
      %v906 = vld [vmem:[%s214 + $0x50] sm:$0xff]
      %v907 = vld [vmem:[%s214 + $0x58] sm:$0xff]
      %v908 = vld [vmem:[%s214 + $0x60] sm:$0xff]
      %v909 = vld [vmem:[%s214 + $0x68] sm:$0xff]
      %v910 = vld [vmem:[%s214 + $0x70] sm:$0xff]
      %v911 = vld [vmem:[%s214 + $0x78] sm:$0xff]
      %v912 = vadd.f32 %v864, 1e-05
      %v913 = vadd.f32 %v865, 1e-05
      %v914 = vadd.f32 %v866, 1e-05
      %v915 = vadd.f32 %v867, 1e-05
      %v916 = vadd.f32 %v868, 1e-05
      %v917 = vadd.f32 %v869, 1e-05
      %v918 = vadd.f32 %v870, 1e-05
      %v919 = vadd.f32 %v871, 1e-05
      %v920 = vadd.f32 %v872, 1e-05
      %v921 = vadd.f32 %v873, 1e-05
      %v922 = vadd.f32 %v874, 1e-05
      %v923 = vadd.f32 %v875, 1e-05
      %v924 = vadd.f32 %v876, 1e-05
      %v925 = vadd.f32 %v877, 1e-05
      %v926 = vadd.f32 %v878, 1e-05
      %v927 = vadd.f32 %v879, 1e-05
      %v928 = vrsqrt.pop %v912
      %v929 = vrsqrt.pop %v913
      %v930 = vrsqrt.pop %v914
      %v931 = vrsqrt.pop %v915
      %v932 = vrsqrt.pop %v916
      %v933 = vrsqrt.pop %v917
      %v934 = vrsqrt.pop %v918
      %v935 = vrsqrt.pop %v919
      %v936 = vrsqrt.pop %v920
      %v937 = vrsqrt.pop %v921
      %v938 = vrsqrt.pop %v922
      %v939 = vrsqrt.pop %v923
      %v940 = vrsqrt.pop %v924
      %v941 = vrsqrt.pop %v925
      %v942 = vrsqrt.pop %v926
      %v943 = vrsqrt.pop %v927
      %v944 = vmul.f32 %v880, %v928
      %v945 = vmul.f32 %v881, %v929
      %v946 = vmul.f32 %v882, %v930
      %v947 = vmul.f32 %v883, %v931
      %v948 = vmul.f32 %v884, %v932
      %v949 = vmul.f32 %v885, %v933
      %v950 = vmul.f32 %v886, %v934
      %v951 = vmul.f32 %v887, %v935
      %v952 = vmul.f32 %v888, %v936
      %v953 = vmul.f32 %v889, %v937
      %v954 = vmul.f32 %v890, %v938
      %v955 = vmul.f32 %v891, %v939
      %v956 = vmul.f32 %v892, %v940
      %v957 = vmul.f32 %v893, %v941
      %v958 = vmul.f32 %v894, %v942
      %v959 = vmul.f32 %v895, %v943
      %961 = vset.pattern.permute.xlu0 0
      %962 = vperm.xlu0 %961, %v944
      %v963 = vpop.permute.xlu0 %962
      %966 = vset.pattern.permute.xlu0 0
      %967 = vperm.xlu0 %966, %v945
      %v968 = vpop.permute.xlu0 %967
      %971 = vset.pattern.permute.xlu0 0
      %972 = vperm.xlu0 %971, %v946
      %v973 = vpop.permute.xlu0 %972
      %976 = vset.pattern.permute.xlu0 0
      %977 = vperm.xlu0 %976, %v947
      %v978 = vpop.permute.xlu0 %977
      %981 = vset.pattern.permute.xlu0 0
      %982 = vperm.xlu0 %981, %v948
      %v983 = vpop.permute.xlu0 %982
      %986 = vset.pattern.permute.xlu0 0
      %987 = vperm.xlu0 %986, %v949
      %v988 = vpop.permute.xlu0 %987
      %991 = vset.pattern.permute.xlu0 0
      %992 = vperm.xlu0 %991, %v950
      %v993 = vpop.permute.xlu0 %992
      %996 = vset.pattern.permute.xlu0 0
      %997 = vperm.xlu0 %996, %v951
      %v998 = vpop.permute.xlu0 %997
      %1001 = vset.pattern.permute.xlu0 0
      %1002 = vperm.xlu0 %1001, %v952
      %v1003 = vpop.permute.xlu0 %1002
      %1006 = vset.pattern.permute.xlu0 0
      %1007 = vperm.xlu0 %1006, %v953
      %v1008 = vpop.permute.xlu0 %1007
      %1011 = vset.pattern.permute.xlu0 0
      %1012 = vperm.xlu0 %1011, %v954
      %v1013 = vpop.permute.xlu0 %1012
      %1016 = vset.pattern.permute.xlu0 0
      %1017 = vperm.xlu0 %1016, %v955
      %v1018 = vpop.permute.xlu0 %1017
      %1021 = vset.pattern.permute.xlu0 0
      %1022 = vperm.xlu0 %1021, %v956
      %v1023 = vpop.permute.xlu0 %1022
      %1026 = vset.pattern.permute.xlu0 0
      %1027 = vperm.xlu0 %1026, %v957
      %v1028 = vpop.permute.xlu0 %1027
      %1031 = vset.pattern.permute.xlu0 0
      %1032 = vperm.xlu0 %1031, %v958
      %v1033 = vpop.permute.xlu0 %1032
      %1036 = vset.pattern.permute.xlu0 0
      %1037 = vperm.xlu0 %1036, %v959
      %v1038 = vpop.permute.xlu0 %1037
      %v1040 = vmul.f32 %v496, %v963
      %v1041 = vmul.f32 %v497, %v963
      %v1042 = vmul.f32 %v498, %v963
      %v1043 = vmul.f32 %v499, %v963
      %v1044 = vmul.f32 %v500, %v963
      %v1045 = vmul.f32 %v501, %v963
      %v1046 = vmul.f32 %v502, %v963
      %v1047 = vmul.f32 %v503, %v968
      %v1048 = vmul.f32 %v504, %v968
      %v1049 = vmul.f32 %v505, %v968
      %v1050 = vmul.f32 %v506, %v968
      %v1051 = vmul.f32 %v507, %v968
      %v1052 = vmul.f32 %v508, %v968
      %v1053 = vmul.f32 %v509, %v968
      %v1054 = vmul.f32 %v510, %v973
      %v1055 = vmul.f32 %v511, %v973
      %v1056 = vmul.f32 %v512, %v973
      %v1057 = vmul.f32 %v513, %v973
      %v1058 = vmul.f32 %v514, %v973
      %v1059 = vmul.f32 %v515, %v973
      %v1060 = vmul.f32 %v516, %v973
      %v1061 = vmul.f32 %v517, %v978
      %v1062 = vmul.f32 %v518, %v978
      %v1063 = vmul.f32 %v519, %v978
      %v1064 = vmul.f32 %v520, %v978
      %v1065 = vmul.f32 %v521, %v978
      %v1066 = vmul.f32 %v522, %v978
      %v1067 = vmul.f32 %v523, %v978
      %v1068 = vmul.f32 %v524, %v983
      %v1069 = vmul.f32 %v525, %v983
      %v1070 = vmul.f32 %v526, %v983
      %v1071 = vmul.f32 %v527, %v983
      %v1072 = vmul.f32 %v528, %v983
      %v1073 = vmul.f32 %v529, %v983
      %v1074 = vmul.f32 %v530, %v983
      %v1075 = vmul.f32 %v531, %v988
      %v1076 = vmul.f32 %v532, %v988
      %v1077 = vmul.f32 %v533, %v988
      %v1078 = vmul.f32 %v534, %v988
      %v1079 = vmul.f32 %v535, %v988
      %v1080 = vmul.f32 %v536, %v988
      %v1081 = vmul.f32 %v537, %v988
      %v1082 = vmul.f32 %v538, %v993
      %v1083 = vmul.f32 %v539, %v993
      %v1084 = vmul.f32 %v540, %v993
      %v1085 = vmul.f32 %v541, %v993
      %v1086 = vmul.f32 %v542, %v993
      %v1087 = vmul.f32 %v543, %v993
      %v1088 = vmul.f32 %v544, %v993
      %v1089 = vmul.f32 %v545, %v998
      %v1090 = vmul.f32 %v546, %v998
      %v1091 = vmul.f32 %v547, %v998
      %v1092 = vmul.f32 %v548, %v998
      %v1093 = vmul.f32 %v549, %v998
      %v1094 = vmul.f32 %v550, %v998
      %v1095 = vmul.f32 %v551, %v998
      %v1096 = vmul.f32 %v552, %v1003
      %v1097 = vmul.f32 %v553, %v1003
      %v1098 = vmul.f32 %v554, %v1003
      %v1099 = vmul.f32 %v555, %v1003
      %v1100 = vmul.f32 %v556, %v1003
      %v1101 = vmul.f32 %v557, %v1003
      %v1102 = vmul.f32 %v558, %v1003
      %v1103 = vmul.f32 %v559, %v1008
      %v1104 = vmul.f32 %v560, %v1008
      %v1105 = vmul.f32 %v561, %v1008
      %v1106 = vmul.f32 %v562, %v1008
      %v1107 = vmul.f32 %v563, %v1008
      %v1108 = vmul.f32 %v564, %v1008
      %v1109 = vmul.f32 %v565, %v1008
      %v1110 = vmul.f32 %v566, %v1013
      %v1111 = vmul.f32 %v567, %v1013
      %v1112 = vmul.f32 %v568, %v1013
      %v1113 = vmul.f32 %v569, %v1013
      %v1114 = vmul.f32 %v570, %v1013
      %v1115 = vmul.f32 %v571, %v1013
      %v1116 = vmul.f32 %v572, %v1013
      %v1117 = vmul.f32 %v573, %v1018
      %v1118 = vmul.f32 %v574, %v1018
      %v1119 = vmul.f32 %v575, %v1018
      %v1120 = vmul.f32 %v576, %v1018
      %v1121 = vmul.f32 %v577, %v1018
      %v1122 = vmul.f32 %v578, %v1018
      %v1123 = vmul.f32 %v579, %v1018
      %v1124 = vmul.f32 %v580, %v1023
      %v1125 = vmul.f32 %v581, %v1023
      %v1126 = vmul.f32 %v582, %v1023
      %v1127 = vmul.f32 %v583, %v1023
      %v1128 = vmul.f32 %v584, %v1023
      %v1129 = vmul.f32 %v585, %v1023
      %v1130 = vmul.f32 %v586, %v1023
      %v1131 = vmul.f32 %v587, %v1028
      %v1132 = vmul.f32 %v588, %v1028
      %v1133 = vmul.f32 %v589, %v1028
      %v1134 = vmul.f32 %v590, %v1028
      %v1135 = vmul.f32 %v591, %v1028
      %v1136 = vmul.f32 %v592, %v1028
      %v1137 = vmul.f32 %v593, %v1028
      %v1138 = vmul.f32 %v594, %v1033
      %v1139 = vmul.f32 %v595, %v1033
      %v1140 = vmul.f32 %v596, %v1033
      %v1141 = vmul.f32 %v597, %v1033
      %v1142 = vmul.f32 %v598, %v1033
      %v1143 = vmul.f32 %v599, %v1033
      %v1144 = vmul.f32 %v600, %v1033
      %v1145 = vmul.f32 %v601, %v1038
      %v1146 = vmul.f32 %v602, %v1038
      %v1147 = vmul.f32 %v603, %v1038
      %v1148 = vmul.f32 %v604, %v1038
      %v1149 = vmul.f32 %v605, %v1038
      %v1150 = vmul.f32 %v606, %v1038
      %v1151 = vmul.f32 %v607, %v1038
      %1153 = vset.pattern.permute.xlu0 0
      %1154 = vperm.xlu0 %1153, %v896
      %v1155 = vpop.permute.xlu0 %1154
      %1158 = vset.pattern.permute.xlu0 0
      %1159 = vperm.xlu0 %1158, %v897
      %v1160 = vpop.permute.xlu0 %1159
      %1163 = vset.pattern.permute.xlu0 0
      %1164 = vperm.xlu0 %1163, %v898
      %v1165 = vpop.permute.xlu0 %1164
      %1168 = vset.pattern.permute.xlu0 0
      %1169 = vperm.xlu0 %1168, %v899
      %v1170 = vpop.permute.xlu0 %1169
      %1173 = vset.pattern.permute.xlu0 0
      %1174 = vperm.xlu0 %1173, %v900
      %v1175 = vpop.permute.xlu0 %1174
      %1178 = vset.pattern.permute.xlu0 0
      %1179 = vperm.xlu0 %1178, %v901
      %v1180 = vpop.permute.xlu0 %1179
      %1183 = vset.pattern.permute.xlu0 0
      %1184 = vperm.xlu0 %1183, %v902
      %v1185 = vpop.permute.xlu0 %1184
      %1188 = vset.pattern.permute.xlu0 0
      %1189 = vperm.xlu0 %1188, %v903
      %v1190 = vpop.permute.xlu0 %1189
      %1193 = vset.pattern.permute.xlu0 0
      %1194 = vperm.xlu0 %1193, %v904
      %v1195 = vpop.permute.xlu0 %1194
      %1198 = vset.pattern.permute.xlu0 0
      %1199 = vperm.xlu0 %1198, %v905
      %v1200 = vpop.permute.xlu0 %1199
      %1203 = vset.pattern.permute.xlu0 0
      %1204 = vperm.xlu0 %1203, %v906
      %v1205 = vpop.permute.xlu0 %1204
      %1208 = vset.pattern.permute.xlu0 0
      %1209 = vperm.xlu0 %1208, %v907
      %v1210 = vpop.permute.xlu0 %1209
      %1213 = vset.pattern.permute.xlu0 0
      %1214 = vperm.xlu0 %1213, %v908
      %v1215 = vpop.permute.xlu0 %1214
      %1218 = vset.pattern.permute.xlu0 0
      %1219 = vperm.xlu0 %1218, %v909
      %v1220 = vpop.permute.xlu0 %1219
      %1223 = vset.pattern.permute.xlu0 0
      %1224 = vperm.xlu0 %1223, %v910
      %v1225 = vpop.permute.xlu0 %1224
      %1228 = vset.pattern.permute.xlu0 0
      %1229 = vperm.xlu0 %1228, %v911
      %v1230 = vpop.permute.xlu0 %1229
      %v1232 = vadd.f32 %v1040, %v1155
      %v1233 = vadd.f32 %v1041, %v1155
      %v1234 = vadd.f32 %v1042, %v1155
      %v1235 = vadd.f32 %v1043, %v1155
      %v1236 = vadd.f32 %v1044, %v1155
      %v1237 = vadd.f32 %v1045, %v1155
      %v1238 = vadd.f32 %v1046, %v1155
      %v1239 = vadd.f32 %v1047, %v1160
      %v1240 = vadd.f32 %v1048, %v1160
      %v1241 = vadd.f32 %v1049, %v1160
      %v1242 = vadd.f32 %v1050, %v1160
      %v1243 = vadd.f32 %v1051, %v1160
      %v1244 = vadd.f32 %v1052, %v1160
      %v1245 = vadd.f32 %v1053, %v1160
      %v1246 = vadd.f32 %v1054, %v1165
      %v1247 = vadd.f32 %v1055, %v1165
      %v1248 = vadd.f32 %v1056, %v1165
      %v1249 = vadd.f32 %v1057, %v1165
      %v1250 = vadd.f32 %v1058, %v1165
      %v1251 = vadd.f32 %v1059, %v1165
      %v1252 = vadd.f32 %v1060, %v1165
      %v1253 = vadd.f32 %v1061, %v1170
      %v1254 = vadd.f32 %v1062, %v1170
      %v1255 = vadd.f32 %v1063, %v1170
      %v1256 = vadd.f32 %v1064, %v1170
      %v1257 = vadd.f32 %v1065, %v1170
      %v1258 = vadd.f32 %v1066, %v1170
      %v1259 = vadd.f32 %v1067, %v1170
      %v1260 = vadd.f32 %v1068, %v1175
      %v1261 = vadd.f32 %v1069, %v1175
      %v1262 = vadd.f32 %v1070, %v1175
      %v1263 = vadd.f32 %v1071, %v1175
      %v1264 = vadd.f32 %v1072, %v1175
      %v1265 = vadd.f32 %v1073, %v1175
      %v1266 = vadd.f32 %v1074, %v1175
      %v1267 = vadd.f32 %v1075, %v1180
      %v1268 = vadd.f32 %v1076, %v1180
      %v1269 = vadd.f32 %v1077, %v1180
      %v1270 = vadd.f32 %v1078, %v1180
      %v1271 = vadd.f32 %v1079, %v1180
      %v1272 = vadd.f32 %v1080, %v1180
      %v1273 = vadd.f32 %v1081, %v1180
      %v1274 = vadd.f32 %v1082, %v1185
      %v1275 = vadd.f32 %v1083, %v1185
      %v1276 = vadd.f32 %v1084, %v1185
      %v1277 = vadd.f32 %v1085, %v1185
      %v1278 = vadd.f32 %v1086, %v1185
      %v1279 = vadd.f32 %v1087, %v1185
      %v1280 = vadd.f32 %v1088, %v1185
      %v1281 = vadd.f32 %v1089, %v1190
      %v1282 = vadd.f32 %v1090, %v1190
      %v1283 = vadd.f32 %v1091, %v1190
      %v1284 = vadd.f32 %v1092, %v1190
      %v1285 = vadd.f32 %v1093, %v1190
      %v1286 = vadd.f32 %v1094, %v1190
      %v1287 = vadd.f32 %v1095, %v1190
      %v1288 = vadd.f32 %v1096, %v1195
      %v1289 = vadd.f32 %v1097, %v1195
      %v1290 = vadd.f32 %v1098, %v1195
      %v1291 = vadd.f32 %v1099, %v1195
      %v1292 = vadd.f32 %v1100, %v1195
      %v1293 = vadd.f32 %v1101, %v1195
      %v1294 = vadd.f32 %v1102, %v1195
      %v1295 = vadd.f32 %v1103, %v1200
      %v1296 = vadd.f32 %v1104, %v1200
      %v1297 = vadd.f32 %v1105, %v1200
      %v1298 = vadd.f32 %v1106, %v1200
      %v1299 = vadd.f32 %v1107, %v1200
      %v1300 = vadd.f32 %v1108, %v1200
      %v1301 = vadd.f32 %v1109, %v1200
      %v1302 = vadd.f32 %v1110, %v1205
      %v1303 = vadd.f32 %v1111, %v1205
      %v1304 = vadd.f32 %v1112, %v1205
      %v1305 = vadd.f32 %v1113, %v1205
      %v1306 = vadd.f32 %v1114, %v1205
      %v1307 = vadd.f32 %v1115, %v1205
      %v1308 = vadd.f32 %v1116, %v1205
      %v1309 = vadd.f32 %v1117, %v1210
      %v1310 = vadd.f32 %v1118, %v1210
      %v1311 = vadd.f32 %v1119, %v1210
      %v1312 = vadd.f32 %v1120, %v1210
      %v1313 = vadd.f32 %v1121, %v1210
      %v1314 = vadd.f32 %v1122, %v1210
      %v1315 = vadd.f32 %v1123, %v1210
      %v1316 = vadd.f32 %v1124, %v1215
      %v1317 = vadd.f32 %v1125, %v1215
      %v1318 = vadd.f32 %v1126, %v1215
      %v1319 = vadd.f32 %v1127, %v1215
      %v1320 = vadd.f32 %v1128, %v1215
      %v1321 = vadd.f32 %v1129, %v1215
      %v1322 = vadd.f32 %v1130, %v1215
      %v1323 = vadd.f32 %v1131, %v1220
      %v1324 = vadd.f32 %v1132, %v1220
      %v1325 = vadd.f32 %v1133, %v1220
      %v1326 = vadd.f32 %v1134, %v1220
      %v1327 = vadd.f32 %v1135, %v1220
      %v1328 = vadd.f32 %v1136, %v1220
      %v1329 = vadd.f32 %v1137, %v1220
      %v1330 = vadd.f32 %v1138, %v1225
      %v1331 = vadd.f32 %v1139, %v1225
      %v1332 = vadd.f32 %v1140, %v1225
      %v1333 = vadd.f32 %v1141, %v1225
      %v1334 = vadd.f32 %v1142, %v1225
      %v1335 = vadd.f32 %v1143, %v1225
      %v1336 = vadd.f32 %v1144, %v1225
      %v1337 = vadd.f32 %v1145, %v1230
      %v1338 = vadd.f32 %v1146, %v1230
      %v1339 = vadd.f32 %v1147, %v1230
      %v1340 = vadd.f32 %v1148, %v1230
      %v1341 = vadd.f32 %v1149, %v1230
      %v1342 = vadd.f32 %v1150, %v1230
      %v1343 = vadd.f32 %v1151, %v1230
      %1344 = vst [vmem:[%s221] sm:$0xff] %v1232
      %1345 = vst [vmem:[%s221 + $0x8] sm:$0xff] %v1233
      %1346 = vst [vmem:[%s221 + $0x10] sm:$0xff] %v1234
      %1347 = vst [vmem:[%s221 + $0x18] sm:$0xff] %v1235
      %1348 = vst [vmem:[%s221 + $0x20] sm:$0xff] %v1236
      %1349 = vst [vmem:[%s221 + $0x28] sm:$0xff] %v1237
      %1350 = vst.msk [vmem:[%s221 + $0x30] sm:$0xff] %vm340, %v1238
      %1351 = vst [vmem:[%s221 + $0x38] sm:$0xff] %v1239
      %1352 = vst [vmem:[%s221 + $0x40] sm:$0xff] %v1240
      %1353 = vst [vmem:[%s221 + $0x48] sm:$0xff] %v1241
      %1354 = vst [vmem:[%s221 + $0x50] sm:$0xff] %v1242
      %1355 = vst [vmem:[%s221 + $0x58] sm:$0xff] %v1243
      %1356 = vst [vmem:[%s221 + $0x60] sm:$0xff] %v1244
      %1357 = vst.msk [vmem:[%s221 + $0x68] sm:$0xff] %vm340, %v1245
      %1358 = vst [vmem:[%s221 + $0x70] sm:$0xff] %v1246
      %1359 = vst [vmem:[%s221 + $0x78] sm:$0xff] %v1247
      %1360 = vst [vmem:[%s221 + $0x80] sm:$0xff] %v1248
      %1361 = vst [vmem:[%s221 + $0x88] sm:$0xff] %v1249
      %1362 = vst [vmem:[%s221 + $0x90] sm:$0xff] %v1250
      %1363 = vst [vmem:[%s221 + $0x98] sm:$0xff] %v1251
      %1364 = vst.msk [vmem:[%s221 + $0xa0] sm:$0xff] %vm340, %v1252
      %1365 = vst [vmem:[%s221 + $0xa8] sm:$0xff] %v1253
      %1366 = vst [vmem:[%s221 + $0xb0] sm:$0xff] %v1254
      %1367 = vst [vmem:[%s221 + $0xb8] sm:$0xff] %v1255
      %1368 = vst [vmem:[%s221 + $0xc0] sm:$0xff] %v1256
      %1369 = vst [vmem:[%s221 + $0xc8] sm:$0xff] %v1257
      %1370 = vst [vmem:[%s221 + $0xd0] sm:$0xff] %v1258
      %1371 = vst.msk [vmem:[%s221 + $0xd8] sm:$0xff] %vm340, %v1259
      %1372 = vst [vmem:[%s221 + $0xe0] sm:$0xff] %v1260
      %1373 = vst [vmem:[%s221 + $0xe8] sm:$0xff] %v1261
      %1374 = vst [vmem:[%s221 + $0xf0] sm:$0xff] %v1262
      %1375 = vst [vmem:[%s221 + $0xf8] sm:$0xff] %v1263
      %1376 = vst [vmem:[%s221 + $0x100] sm:$0xff] %v1264
      %1377 = vst [vmem:[%s221 + $0x108] sm:$0xff] %v1265
      %1378 = vst.msk [vmem:[%s221 + $0x110] sm:$0xff] %vm340, %v1266
      %1379 = vst [vmem:[%s221 + $0x118] sm:$0xff] %v1267
      %1380 = vst [vmem:[%s221 + $0x120] sm:$0xff] %v1268
      %1381 = vst [vmem:[%s221 + $0x128] sm:$0xff] %v1269
      %1382 = vst [vmem:[%s221 + $0x130] sm:$0xff] %v1270
      %1383 = vst [vmem:[%s221 + $0x138] sm:$0xff] %v1271
      %1384 = vst [vmem:[%s221 + $0x140] sm:$0xff] %v1272
      %1385 = vst.msk [vmem:[%s221 + $0x148] sm:$0xff] %vm340, %v1273
      %1386 = vst [vmem:[%s221 + $0x150] sm:$0xff] %v1274
      %1387 = vst [vmem:[%s221 + $0x158] sm:$0xff] %v1275
      %1388 = vst [vmem:[%s221 + $0x160] sm:$0xff] %v1276
      %1389 = vst [vmem:[%s221 + $0x168] sm:$0xff] %v1277
      %1390 = vst [vmem:[%s221 + $0x170] sm:$0xff] %v1278
      %1391 = vst [vmem:[%s221 + $0x178] sm:$0xff] %v1279
      %1392 = vst.msk [vmem:[%s221 + $0x180] sm:$0xff] %vm340, %v1280
      %1393 = vst [vmem:[%s221 + $0x188] sm:$0xff] %v1281
      %1394 = vst [vmem:[%s221 + $0x190] sm:$0xff] %v1282
      %1395 = vst [vmem:[%s221 + $0x198] sm:$0xff] %v1283
      %1396 = vst [vmem:[%s221 + $0x1a0] sm:$0xff] %v1284
      %1397 = vst [vmem:[%s221 + $0x1a8] sm:$0xff] %v1285
      %1398 = vst [vmem:[%s221 + $0x1b0] sm:$0xff] %v1286
      %1399 = vst.msk [vmem:[%s221 + $0x1b8] sm:$0xff] %vm340, %v1287
      %1400 = vst [vmem:[%s221 + $0x1c0] sm:$0xff] %v1288
      %1401 = vst [vmem:[%s221 + $0x1c8] sm:$0xff] %v1289
      %1402 = vst [vmem:[%s221 + $0x1d0] sm:$0xff] %v1290
      %1403 = vst [vmem:[%s221 + $0x1d8] sm:$0xff] %v1291
      %1404 = vst [vmem:[%s221 + $0x1e0] sm:$0xff] %v1292
      %1405 = vst [vmem:[%s221 + $0x1e8] sm:$0xff] %v1293
      %1406 = vst.msk [vmem:[%s221 + $0x1f0] sm:$0xff] %vm340, %v1294
      %1407 = vst [vmem:[%s221 + $0x1f8] sm:$0xff] %v1295
      %1408 = vst [vmem:[%s221 + $0x200] sm:$0xff] %v1296
      %1409 = vst [vmem:[%s221 + $0x208] sm:$0xff] %v1297
      %1410 = vst [vmem:[%s221 + $0x210] sm:$0xff] %v1298
      %1411 = vst [vmem:[%s221 + $0x218] sm:$0xff] %v1299
      %1412 = vst [vmem:[%s221 + $0x220] sm:$0xff] %v1300
      %1413 = vst.msk [vmem:[%s221 + $0x228] sm:$0xff] %vm340, %v1301
      %1414 = vst [vmem:[%s221 + $0x230] sm:$0xff] %v1302
      %1415 = vst [vmem:[%s221 + $0x238] sm:$0xff] %v1303
      %1416 = vst [vmem:[%s221 + $0x240] sm:$0xff] %v1304
      %1417 = vst [vmem:[%s221 + $0x248] sm:$0xff] %v1305
      %1418 = vst [vmem:[%s221 + $0x250] sm:$0xff] %v1306
      %1419 = vst [vmem:[%s221 + $0x258] sm:$0xff] %v1307
      %1420 = vst.msk [vmem:[%s221 + $0x260] sm:$0xff] %vm340, %v1308
      %1421 = vst [vmem:[%s221 + $0x268] sm:$0xff] %v1309
      %1422 = vst [vmem:[%s221 + $0x270] sm:$0xff] %v1310
      %1423 = vst [vmem:[%s221 + $0x278] sm:$0xff] %v1311
      %1424 = vst [vmem:[%s221 + $0x280] sm:$0xff] %v1312
      %1425 = vst [vmem:[%s221 + $0x288] sm:$0xff] %v1313
      %1426 = vst [vmem:[%s221 + $0x290] sm:$0xff] %v1314
      %1427 = vst.msk [vmem:[%s221 + $0x298] sm:$0xff] %vm340, %v1315
      %1428 = vst [vmem:[%s221 + $0x2a0] sm:$0xff] %v1316
      %1429 = vst [vmem:[%s221 + $0x2a8] sm:$0xff] %v1317
      %1430 = vst [vmem:[%s221 + $0x2b0] sm:$0xff] %v1318
      %1431 = vst [vmem:[%s221 + $0x2b8] sm:$0xff] %v1319
      %1432 = vst [vmem:[%s221 + $0x2c0] sm:$0xff] %v1320
      %1433 = vst [vmem:[%s221 + $0x2c8] sm:$0xff] %v1321
      %1434 = vst.msk [vmem:[%s221 + $0x2d0] sm:$0xff] %vm340, %v1322
      %1435 = vst [vmem:[%s221 + $0x2d8] sm:$0xff] %v1323
      %1436 = vst [vmem:[%s221 + $0x2e0] sm:$0xff] %v1324
      %1437 = vst [vmem:[%s221 + $0x2e8] sm:$0xff] %v1325
      %1438 = vst [vmem:[%s221 + $0x2f0] sm:$0xff] %v1326
      %1439 = vst [vmem:[%s221 + $0x2f8] sm:$0xff] %v1327
      %1440 = vst [vmem:[%s221 + $0x300] sm:$0xff] %v1328
      %1441 = vst.msk [vmem:[%s221 + $0x308] sm:$0xff] %vm340, %v1329
      %1442 = vst [vmem:[%s221 + $0x310] sm:$0xff] %v1330
      %1443 = vst [vmem:[%s221 + $0x318] sm:$0xff] %v1331
      %1444 = vst [vmem:[%s221 + $0x320] sm:$0xff] %v1332
      %1445 = vst [vmem:[%s221 + $0x328] sm:$0xff] %v1333
      %1446 = vst [vmem:[%s221 + $0x330] sm:$0xff] %v1334
      %1447 = vst [vmem:[%s221 + $0x338] sm:$0xff] %v1335
      %1448 = vst.msk [vmem:[%s221 + $0x340] sm:$0xff] %vm340, %v1336
      %1449 = vst [vmem:[%s221 + $0x348] sm:$0xff] %v1337
      %1450 = vst [vmem:[%s221 + $0x350] sm:$0xff] %v1338
      %1451 = vst [vmem:[%s221 + $0x358] sm:$0xff] %v1339
      %1452 = vst [vmem:[%s221 + $0x360] sm:$0xff] %v1340
      %1453 = vst [vmem:[%s221 + $0x368] sm:$0xff] %v1341
      %1454 = vst [vmem:[%s221 + $0x370] sm:$0xff] %v1342
      %1455 = vst.msk [vmem:[%s221 + $0x378] sm:$0xff] %vm340, %v1343
      %s1456 = smul.u32 16, %s14
      %p1457 = scmp.lt.s32.totalorder %s1456, 63
      %s1458 = scalar_select %p1457, %s1456, 63
      %s1459 = smul.addr %s1458, 7
      %s1460 = smul.addr %s1459, 8
      %s1461 = scalar_lea.vmem %s3, %s1460
      // Predicated region
      $region33: #{tpu_custom_call.1} parent=31 // pred_check
        %p1462 = pneg %p110
      $region34: #{tpu_custom_call.1} parent=31 // pred_check_branch
        %1464 = sbr.rel (%p1462) target = $region36
      $region35: #{tpu_custom_call.1} parent=31 // pred_region
        %s1465 = smul.u32 16, %s14
      $region36: #{tpu_custom_call.1} parent=31 // pred_fallthru
        _
    $region32: #{tpu_custom_call.1} parent=5 // pred_fallthru
      _
    %p1466 = scmp.le.s32.totalorder 2, %s9
    // Predicated region
    $region37: #{tpu_custom_call.1} parent=5 // pred_check
      %p1467 = pneg %p1466
    $region38: #{tpu_custom_call.1} parent=5 // pred_check_branch
      %1469 = sbr.rel (%p1467) target = $region40
    $region39: #{tpu_custom_call.1} parent=5 // pred_region
      %s1470 = ssub.s32 %s9, 2
      // Predicated region
      $region41: #{tpu_custom_call.1} parent=39 // pred_check
        %p1471 = pneg %p116
      $region42: #{tpu_custom_call.1} parent=39 // pred_check_branch
        %1473 = sbr.rel (%p1471) target = $region44
      $region43: #{tpu_custom_call.1} parent=39 // pred_region
        %s1474 = smul.u32 16, %s15
        %p1475 = scmp.lt.s32.totalorder %s1474, 63
        %s1476 = scalar_select %p1475, %s1474, 63
        %s1477 = smul.addr %s1476, 7
        %s1478 = smul.addr %s1477, 8
        %s1479 = scalar_lea.vmem %s3, %s1478
      $region44: #{tpu_custom_call.1} parent=39 // pred_fallthru
        _
    $region40: #{tpu_custom_call.1} parent=5 // pred_fallthru
      _
  $region6: #{tpu_custom_call.1} parent=0 // loop_footer
    %s13 = sadd.s32 1, %s9
  $region7: #{tpu_custom_call.1} parent=0 // loop_footer_branch
    %8 = sbr.rel target = $region3
  $region8: #{tpu_custom_call.1} parent=0 // loop_exit
    _

</llo_original>
